<compile_context>
chip_gen: v6e
topology: v6e:2x2x1
jax: 0.10.0
libtpu: 0.0.40
codegen_flags: <defaults>
</compile_context>

<pallas_src>
import functools
import math

import jax
import jax.numpy as jnp
import numpy as np
from jax import lax
from jax.experimental import pallas as pl
from jax.experimental.pallas import tpu as pltpu


# ---------------------------------------------------------------------------
# Helpers
# ---------------------------------------------------------------------------
def _pick_tile(dim, target, align):
    """Largest tile <= target that divides `dim` and is `align`-aligned, else full dim."""
    if dim <= target:
        return dim
    t = (target // align) * align
    while t >= align:
        if dim % t == 0:
            return t
        t -= align
    return dim  # fall back to the full dimension (always a legal block)


def _half_layout_row_perm(n_heads, head_dim):
    """Row permutation taking interleaved (r0,i0,r1,i1,...) per head to half layout
    (r0..r_{hd/2-1}, i0..i_{hd/2-1}).  Applied once to wq/wk rows (zero runtime cost)."""
    idx = np.arange(n_heads * head_dim).reshape(n_heads, head_dim // 2, 2)
    return np.concatenate([idx[..., 0], idx[..., 1]], axis=-1).reshape(-1)


# ---------------------------------------------------------------------------
# Tiled matmul (projections)
# ---------------------------------------------------------------------------
def _matmul_kernel(x_ref, w_ref, o_ref, acc_ref):
    @pl.when(pl.program_id(2) == 0)
    def _():
        acc_ref[...] = jnp.zeros(acc_ref.shape, dtype=jnp.float32)

    acc_ref[...] += jnp.dot(x_ref[...], w_ref[...], preferred_element_type=jnp.float32)

    @pl.when(pl.program_id(2) == pl.num_programs(2) - 1)
    def _():
        o_ref[...] = acc_ref[...].astype(o_ref.dtype)


def pallas_matmul(x, w, *, tiles=(256, 256, 512)):
    """y = x @ w with x:(M,K), w:(K,N); tiled (M,N,K) grid with f32 accumulation."""
    M, K = x.shape
    K2, N = w.shape
    assert K == K2
    tm = _pick_tile(M, tiles[0], 8)
    tn = _pick_tile(N, tiles[1], 128)
    tk = _pick_tile(K, tiles[2], 128)
    grid = (M // tm, N // tn, K // tk)
    return pl.pallas_call(
        _matmul_kernel,
        out_shape=jax.ShapeDtypeStruct((M, N), x.dtype),
        grid_spec=pltpu.PrefetchScalarGridSpec(
            num_scalar_prefetch=0,
            grid=grid,
            in_specs=[
                pl.BlockSpec((tm, tk), lambda i, j, k: (i, k)),
                pl.BlockSpec((tk, tn), lambda i, j, k: (k, j)),
            ],
            out_specs=pl.BlockSpec((tm, tn), lambda i, j, k: (i, j)),
            scratch_shapes=[pltpu.VMEM((tm, tn), jnp.float32)],
        ),
        compiler_params=pltpu.CompilerParams(
            dimension_semantics=("parallel", "parallel", "arbitrary")),
    )(x, w)


# ---------------------------------------------------------------------------
# RoPE kernel (used for K: rotation computed once per element, not n_rep times)
# ---------------------------------------------------------------------------
def _rope_kernel(cos_ref, sin_ref, x_ref, o_ref):
    hd2 = cos_ref.shape[-1]
    x = x_ref[0, 0].astype(jnp.float32)          # (tt, hd), half layout
    cos = cos_ref[...].astype(jnp.float32)       # (tt, hd2)
    sin = sin_ref[...].astype(jnp.float32)
    x_r = x[:, :hd2]
    x_i = x[:, hd2:]
    o = jnp.concatenate([x_r * cos - x_i * sin, x_r * sin + x_i * cos], axis=-1)
    o_ref[0, 0] = o.astype(o_ref.dtype)


def pallas_rope(x, freqs_cos, freqs_sin, *, block_t=512):
    """Apply rotary embedding (half layout) to x:(B,H,T,hd)."""
    B, H, T, hd = x.shape
    hd2 = freqs_cos.shape[-1]
    tt = _pick_tile(T, block_t, 8)
    grid = (B, H, T // tt)
    return pl.pallas_call(
        _rope_kernel,
        out_shape=jax.ShapeDtypeStruct(x.shape, x.dtype),
        grid_spec=pltpu.PrefetchScalarGridSpec(
            num_scalar_prefetch=0,
            grid=grid,
            in_specs=[
                pl.BlockSpec((tt, hd2), lambda b, h, t: (t, 0)),
                pl.BlockSpec((tt, hd2), lambda b, h, t: (t, 0)),
                pl.BlockSpec((1, 1, tt, hd), lambda b, h, t: (b, h, t, 0)),
            ],
            out_specs=pl.BlockSpec((1, 1, tt, hd), lambda b, h, t: (b, h, t, 0)),
        ),
        compiler_params=pltpu.CompilerParams(
            dimension_semantics=("parallel", "parallel", "parallel")),
    )(freqs_cos, freqs_sin, x)


# ---------------------------------------------------------------------------
# Causal flash attention with fused Q-RoPE and GQA head grouping
# ---------------------------------------------------------------------------
def _flash_attn_kernel(cos_ref, sin_ref, q_ref, k_ref, v_ref, o_ref,
                       qrot_ref, m_ref, l_ref, acc_ref, *, scale):
    n_rep, tq, hd = q_ref.shape[1], q_ref.shape[2], q_ref.shape[3]
    tkv = k_ref.shape[2]
    hd2 = cos_ref.shape[-1]
    R = n_rep * tq                      # n_rep query heads folded into the matmul rows

    qi = pl.program_id(2)
    kv = pl.program_id(3)
    last_kv = ((qi + 1) * tq - 1) // tkv   # last kv block overlapping the causal region
    diag_start = (qi * tq) // tkv          # first kv block that can contain masked pairs

    @pl.when(kv == 0)
    def _init():
        # RoPE + 1/sqrt(hd) pre-scaling on the query tile: computed once per
        # (batch, kv-group, q tile) and cached in VMEM scratch in the input dtype so the
        # MXU sees native-precision operands and the per-block score scaling disappears.
        q = q_ref[0].astype(jnp.float32)                     # (n_rep, tq, hd)
        cos = cos_ref[...].astype(jnp.float32)[None]         # (1, tq, hd2)
        sin = sin_ref[...].astype(jnp.float32)[None]
        q_r = q[..., :hd2]
        q_i = q[..., hd2:]
        rot_r = ((q_r * cos - q_i * sin) * scale).reshape(R, hd2)
        rot_i = ((q_r * sin + q_i * cos) * scale).reshape(R, hd2)
        qrot_ref[...] = jnp.concatenate([rot_r, rot_i], axis=-1).astype(qrot_ref.dtype)
        m_ref[...] = jnp.full(m_ref.shape, -jnp.inf, dtype=jnp.float32)
        l_ref[...] = jnp.zeros(l_ref.shape, dtype=jnp.float32)
        acc_ref[...] = jnp.zeros(acc_ref.shape, dtype=jnp.float32)

    def _scores():
        k = k_ref[0, 0]                  # (tkv, hd) -- pre-rotated by pallas_rope
        q_rot = qrot_ref[...]            # (R, hd), pre-scaled
        # Q @ K^T without materializing a transpose of K.
        return lax.dot_general(q_rot, k, (((1,), (1,)), ((), ())),
                               preferred_element_type=jnp.float32)       # (R, tkv)

    def _online_softmax_update(s):
        v = v_ref[0, 0]                  # (tkv, hd)
        m_prev = m_ref[...]
        m_new = jnp.maximum(m_prev, s.max(axis=-1, keepdims=True))
        alpha = jnp.exp(m_prev - m_new)
        p = jnp.exp(s - m_new)
        l_ref[...] = alpha * l_ref[...] + p.sum(axis=-1, keepdims=True)
        acc_ref[...] = alpha * acc_ref[...] + jnp.dot(
            p.astype(v.dtype), v, preferred_element_type=jnp.float32)
        m_ref[...] = m_new

    # Interior blocks: strictly below the causal diagonal -> no mask work at all.
    @pl.when(kv < diag_start)
    def _interior():
        _online_softmax_update(_scores())

    # Diagonal / partial blocks: apply the causal mask on global positions.
    @pl.when((kv >= diag_start) & (kv <= last_kv))
    def _diagonal():
        s = _scores()
        q_pos = qi * tq + lax.broadcasted_iota(
            jnp.int32, (n_rep, tq, tkv), 1).reshape(R, tkv)
        k_pos = kv * tkv + lax.broadcasted_iota(jnp.int32, (R, tkv), 1)
        _online_softmax_update(jnp.where(k_pos <= q_pos, s, -1e30))

    # (kv > last_kv blocks are fully masked: no compute, and kv_map clamps their DMA.)

    @pl.when(kv == pl.num_programs(3) - 1)
    def _finalize():
        inv_l = pl.reciprocal(l_ref[...], approx=True)       # EUP slot, off the VPU path
        out = (acc_ref[...] * inv_l).astype(o_ref.dtype)
        o_ref[...] = out.reshape(1, n_rep, tq, hd)


def pallas_flash_attention(q, k, v, freqs_cos, freqs_sin, n_rep, *,
                           block_q=256, block_kv=256):
    """q:(B,H,T,hd) un-rotated half layout, k:(B,Hkv,T,hd) rotated, v:(B,Hkv,T,hd)."""
    B, H, T, hd = q.shape
    Hkv = k.shape[1]
    assert H == Hkv * n_rep
    hd2 = freqs_cos.shape[-1]
    tq = _pick_tile(T, block_q, 8)
    tkv = _pick_tile(T, block_kv, 8)
    grid = (B, Hkv, T // tq, T // tkv)
    scale = 1.0 / math.sqrt(hd)
    kernel = functools.partial(_flash_attn_kernel, scale=scale)

    def kv_map(b, g, qi, kv):
        # Clamp: fully-masked kv blocks re-use the previous block index, so Pallas skips
        # their DMA (unchanged index) and pl.when skips their compute.
        last_kv = ((qi + 1) * tq - 1) // tkv
        return (b, g, jnp.minimum(kv, last_kv), 0)

    return pl.pallas_call(
        kernel,
        out_shape=jax.ShapeDtypeStruct((B, H, T, hd), q.dtype),
        grid_spec=pltpu.PrefetchScalarGridSpec(
            num_scalar_prefetch=0,
            grid=grid,
            in_specs=[
                pl.BlockSpec((tq, hd2), lambda b, g, qi, kv: (qi, 0)),                 # cos
                pl.BlockSpec((tq, hd2), lambda b, g, qi, kv: (qi, 0)),                 # sin
                pl.BlockSpec((1, n_rep, tq, hd), lambda b, g, qi, kv: (b, g, qi, 0)),  # q (grouped heads)
                pl.BlockSpec((1, 1, tkv, hd), kv_map),                                 # k (shared per group)
                pl.BlockSpec((1, 1, tkv, hd), kv_map),                                 # v (shared per group)
            ],
            out_specs=pl.BlockSpec((1, n_rep, tq, hd), lambda b, g, qi, kv: (b, g, qi, 0)),
            scratch_shapes=[
                pltpu.VMEM((n_rep * tq, hd), q.dtype),       # rotated + pre-scaled Q tile
                pltpu.VMEM((n_rep * tq, 1), jnp.float32),    # running max m
                pltpu.VMEM((n_rep * tq, 1), jnp.float32),    # running denom l
                pltpu.VMEM((n_rep * tq, hd), jnp.float32),   # output accumulator
            ],
        ),
        compiler_params=pltpu.CompilerParams(
            dimension_semantics=("parallel", "parallel", "parallel", "arbitrary")),
    )(freqs_cos, freqs_sin, q, k, v)


# ---------------------------------------------------------------------------
# Full forward pass
# ---------------------------------------------------------------------------
def attention_forward(x, freqs_cos, freqs_sin, wq, wk, wv, wo, n_heads, n_kv_heads,
                      *, attn_block_q=256, attn_block_kv=256, mm_tiles=(256, 256, 512)):
    """Pallas implementation of Attention.forward (dropout=0 / eval mode)."""
    B, T, dim = x.shape
    head_dim = dim // n_heads
    n_rep = n_heads // n_kv_heads
    q_dim = n_heads * head_dim
    kv_dim = n_kv_heads * head_dim

    # Fold the interleaved->half RoPE layout into the q/k projection weights (one-time,
    # zero-runtime reorder).  V / wo keep the original layout: the attention output
    # inherits V's feature order, so it feeds wo exactly as in the torch module.
    perm_q = _half_layout_row_perm(n_heads, head_dim)
    perm_k = _half_layout_row_perm(n_kv_heads, head_dim)
    w_qkv = jnp.concatenate([wq[perm_q], wk[perm_k], wv], axis=0)        # (q+2kv, dim)

    # Fused QKV projection: x is read from HBM once, one kernel launch.
    qkv = pallas_matmul(x.reshape(B * T, dim), w_qkv.T, tiles=mm_tiles)  # (B*T, q+2kv)
    xq = qkv[:, :q_dim].reshape(B, T, n_heads, head_dim).transpose(0, 2, 1, 3)
    xk = qkv[:, q_dim:q_dim + kv_dim].reshape(B, T, n_kv_heads, head_dim).transpose(0, 2, 1, 3)
    xv = qkv[:, q_dim + kv_dim:].reshape(B, T, n_kv_heads, head_dim).transpose(0, 2, 1, 3)

    # K RoPE once per element (not once per query head); Q RoPE is fused into the flash
    # kernel (computed once per q tile, cached in VMEM scratch).
    xk = pallas_rope(xk, freqs_cos, freqs_sin)

    o = pallas_flash_attention(xq, xk, xv, freqs_cos, freqs_sin, n_rep,
                               block_q=attn_block_q, block_kv=attn_block_kv)  # (B,H,T,hd)

    o = o.transpose(0, 2, 1, 3).reshape(B * T, n_heads * head_dim)
    out = pallas_matmul(o, wo.T, tiles=mm_tiles).reshape(B, T, dim)
    # TODO(synk): attn_dropout / resid_dropout omitted (dropout=0.0 default / eval mode).
    return out


# ---------------------------------------------------------------------------
# Pure-JAX reference (mirrors the PyTorch forward) for validation
# ---------------------------------------------------------------------------
def reference_forward(x, freqs_cos, freqs_sin, wq, wk, wv, wo, n_heads, n_kv_heads):
    B, T, dim = x.shape
    head_dim = dim // n_heads
    n_rep = n_heads // n_kv_heads

    xq = (x @ wq.T).reshape(B, T, n_heads, head_dim)
    xk = (x @ wk.T).reshape(B, T, n_kv_heads, head_dim)
    xv = (x @ wv.T).reshape(B, T, n_kv_heads, head_dim)

    def rope(u):
        ur = u.reshape(*u.shape[:-1], -1, 2)
        r, i = ur[..., 0], ur[..., 1]
        cos = freqs_cos[None, :, None, :]
        sin = freqs_sin[None, :, None, :]
        out_r = r * cos - i * sin
        out_i = r * sin + i * cos
        return jnp.stack([out_r, out_i], axis=-1).reshape(u.shape)

    xq, xk = rope(xq), rope(xk)
    xk = jnp.repeat(xk, n_rep, axis=2)
    xv = jnp.repeat(xv, n_rep, axis=2)

    q = xq.transpose(0, 2, 1, 3)
    k = xk.transpose(0, 2, 1, 3)
    v = xv.transpose(0, 2, 1, 3)

    scores = jnp.einsum("bhqd,bhkd->bhqk", q, k) / math.sqrt(head_dim)
    mask = jnp.triu(jnp.full((T, T), -jnp.inf, dtype=jnp.float32), k=1)
    scores = scores + mask[None, None]
    p = jax.nn.softmax(scores, axis=-1)
    o = jnp.einsum("bhqk,bhkd->bhqd", p, v)
    o = o.transpose(0, 2, 1, 3).reshape(B, T, dim)
    return o @ wo.T


# ---------------------------------------------------------------------------
if __name__ == "__main__":
    # Small ModelArgs-consistent shapes.
    B, T = 2, 32
    dim = 256
    n_heads = 4
    n_kv_heads = 2
    head_dim = dim // n_heads  # 64

    key = jax.random.PRNGKey(0)
    kx, kq, kk, kv, ko = jax.random.split(key, 5)

    x = jax.random.normal(kx, (B, T, dim), dtype=jnp.float32)
    # nn.Linear(dim, out, bias=False)-shaped weights: (out_features, in_features)
    init = 1.0 / math.sqrt(dim)
    wq = jax.random.uniform(kq, (n_heads * head_dim, dim), jnp.float32, -init, init)
    wk = jax.random.uniform(kk, (n_kv_heads * head_dim, dim), jnp.float32, -init, init)
    wv = jax.random.uniform(kv, (n_kv_heads * head_dim, dim), jnp.float32, -init, init)
    wo = jax.random.uniform(ko, (dim, n_heads * head_dim), jnp.float32, -init, init)

    # rotary frequencies (llama-style precompute), theta = 10000
    inv_freq = 1.0 / (10000.0 ** (jnp.arange(0, head_dim, 2, dtype=jnp.float32) / head_dim))
    t = jnp.arange(T, dtype=jnp.float32)
    freqs = jnp.outer(t, inv_freq)                 # (T, head_dim//2)
    freqs_cos = jnp.cos(freqs)
    freqs_sin = jnp.sin(freqs)

    # Small tiles here so the test exercises the multi-block K accumulation in the matmul
    # and the multi-block causal flash loop (4 q tiles x 4 kv tiles, both interior and
    # diagonal branches).  Production calls use the larger defaults (256-wide tiles, fits
    # scoped VMEM on v5e/v6e/v7x).
    out = attention_forward(x, freqs_cos, freqs_sin, wq, wk, wv, wo, n_heads, n_kv_heads,
                            attn_block_q=8, attn_block_kv=8, mm_tiles=(32, 128, 128))
    out = jax.block_until_ready(out)

    ref = reference_forward(x, freqs_cos, freqs_sin, wq, wk, wv, wo, n_heads, n_kv_heads)
    # tolerance loosened slightly for pl.reciprocal(approx=True) in the softmax finalize
    np.testing.assert_allclose(np.asarray(out), np.asarray(ref), atol=2e-3, rtol=2e-3)

    print("KERNEL_OK")
</pallas_src>

<mosaic_0001>
module attributes {stable_mosaic.version = 11 : i64} {
  func.func @_matmul_kernel(%arg0: i32, %arg1: i32, %arg2: i32, %arg3: memref<32x128xf32, #tpu.memory_space<vmem>>, %arg4: memref<128x128xf32, #tpu.memory_space<vmem>>, %arg5: memref<32x128xf32, #tpu.memory_space<vmem>>, %arg6: memref<32x128xf32, #tpu.memory_space<vmem>>) attributes {dimension_semantics = [#tpu.dimension_semantics<parallel>, #tpu.dimension_semantics<parallel>, #tpu.dimension_semantics<arbitrary>], iteration_bounds = array<i64: 2, 4, 2>, scalar_prefetch = 0 : i64, scratch_operands = 1 : i64, tpu.core_type = #tpu.core_type<tc>, window_params = [{transform_indices = @transform_0, window_bounds = array<i64: 32, 128>}, {transform_indices = @transform_1, window_bounds = array<i64: 128, 128>}, {transform_indices = @transform_2, window_bounds = array<i64: 32, 128>}]} {
    %c0_i32 = arith.constant 0 : i32
    %0 = arith.cmpi eq, %arg2, %c0_i32 : i32
    %1 = arith.extui %0 : i1 to i32
    %c0_i32_0 = arith.constant 0 : i32
    %2 = arith.cmpi ne, %1, %c0_i32_0 : i32
    scf.if %2 {
      %cst_9 = arith.constant 0.000000e+00 : f32
      %12 = vector.broadcast %cst_9 : f32 to vector<32x128xf32>
      %c0_10 = arith.constant 0 : index
      %c0_11 = arith.constant 0 : index
      %13 = vector.load %arg6[%c0_10, %c0_11] : memref<32x128xf32, #tpu.memory_space<vmem>>, vector<32x128xf32>
      tpu.vector_store %arg6[%c0_10, %c0_11], %12 {strides = array<i32>} : memref<32x128xf32, #tpu.memory_space<vmem>>, vector<32x128xf32>,
    } else {
    }
    %c0 = arith.constant 0 : index
    %c0_1 = arith.constant 0 : index
    %3 = vector.load %arg6[%c0, %c0_1] : memref<32x128xf32, #tpu.memory_space<vmem>>, vector<32x128xf32>
    %c0_2 = arith.constant 0 : index
    %c0_3 = arith.constant 0 : index
    %4 = vector.load %arg3[%c0_2, %c0_3] : memref<32x128xf32, #tpu.memory_space<vmem>>, vector<32x128xf32>
    %c0_4 = arith.constant 0 : index
    %c0_5 = arith.constant 0 : index
    %5 = vector.load %arg4[%c0_4, %c0_5] : memref<128x128xf32, #tpu.memory_space<vmem>>, vector<128x128xf32>
    %cst = arith.constant dense<0.000000e+00> : vector<32x128xf32>
    %6 = tpu.matmul %4, %5, %cst {dimension_numbers = #tpu.dot_dimension_numbers<[1], [0], [0], [1], [0, 0, 1, 1], [], []>} : vector<32x128xf32>, vector<128x128xf32>, vector<32x128xf32> -> vector<32x128xf32>
    %7 = arith.addf %3, %6 : vector<32x128xf32>
    %c0_6 = arith.constant 0 : index
    %c0_7 = arith.constant 0 : index
    %8 = vector.load %arg6[%c0_6, %c0_7] : memref<32x128xf32, #tpu.memory_space<vmem>>, vector<32x128xf32>
    tpu.vector_store %arg6[%c0_6, %c0_7], %7 {strides = array<i32>} : memref<32x128xf32, #tpu.memory_space<vmem>>, vector<32x128xf32>,
    %c1_i32 = arith.constant 1 : i32
    %9 = arith.cmpi eq, %arg2, %c1_i32 : i32
    %10 = arith.extui %9 : i1 to i32
    %c0_i32_8 = arith.constant 0 : i32
    %11 = arith.cmpi ne, %10, %c0_i32_8 : i32
    scf.if %11 {
      %c0_9 = arith.constant 0 : index
      %c0_10 = arith.constant 0 : index
      %12 = vector.load %arg6[%c0_9, %c0_10] : memref<32x128xf32, #tpu.memory_space<vmem>>, vector<32x128xf32>
      %c0_11 = arith.constant 0 : index
      %c0_12 = arith.constant 0 : index
      %13 = vector.load %arg5[%c0_11, %c0_12] : memref<32x128xf32, #tpu.memory_space<vmem>>, vector<32x128xf32>
      tpu.vector_store %arg5[%c0_11, %c0_12], %12 {strides = array<i32>} : memref<32x128xf32, #tpu.memory_space<vmem>>, vector<32x128xf32>,
    } else {
    }
    return
  }
  func.func @transform_0(%arg0: i32, %arg1: i32, %arg2: i32) -> (i32, i32) {
    %c0_i32 = arith.constant 0 : i32
    return %arg0, %arg2 : i32, i32
  }
  func.func @transform_1(%arg0: i32, %arg1: i32, %arg2: i32) -> (i32, i32) {
    %c0_i32 = arith.constant 0 : i32
    return %arg2, %arg1 : i32, i32
  }
  func.func @transform_2(%arg0: i32, %arg1: i32, %arg2: i32) -> (i32, i32) {
    %c0_i32 = arith.constant 0 : i32
    return %arg0, %arg1 : i32, i32
  }
}

</mosaic_0001>

<llo_original>
// kernel: tpu_custom_call.1
$region0: #{tpu_custom_call.1}
  #allocation0 [shape = 'u32[]', space=smem, size = 0x4, offset = 0x4, fixed_abs, tag = 'smem constant byte address 0x4 - core index']
  #allocation1 [shape = 'u32[144,128]{1,0:T(1,128)}', space=vmem, size = 0x12000, scoped, tag = 'internal scratch']
  #allocation2 [shape = 'f32[32,128]{1,0:T(8,128)}', space=vmem, size = 0x4000, scoped, tag = 'scratch operand']
  %s0 = inlined_call_operand.hbm [shape: f32[64,256], index: 0, kind: input, shape index: {}]
  %s1 = inlined_call_operand.hbm [shape: f32[256,512], index: 1, kind: input, shape index: {}]
  %s2 = inlined_call_operand.hbm [shape: f32[64,512], index: 2, kind: output, shape index: {}]
  %s3 = sld [smem:[#allocation0]]
  $region57: #{tpu_custom_call.1} parent=0
    _
  %s5 = ssub.s32 1, %s3
  %s6 = scalar_select 0, %s5, %s3
  $region1: #{tpu_custom_call.1} parent=0
    #allocation3 [shape = 'u8[32768]{0}', space=vmem, size = 0x8000, scoped, tag = 'input window, operand 0']
    #allocation4 [shape = 's32[2]{0}', space=sflag, size = 0x8, scoped, tag = 'scoped memory for tpu_custom_call.1']
    #allocation5 [shape = 's32[2]{0}', space=sflag, size = 0x8, scoped, tag = 'scoped memory for tpu_custom_call.1']
    #allocation6 [shape = 'u8[131072]{0}', space=vmem, size = 0x20000, scoped, tag = 'input window, operand 1']
    #allocation7 [shape = 's32[2]{0}', space=sflag, size = 0x8, scoped, tag = 'scoped memory for tpu_custom_call.1']
    #allocation8 [shape = 'u8[32768]{0}', space=vmem, size = 0x8000, scoped, tag = 'output window, operand 0']
    %7 = vsyncpa [#allocation4], 0
    %s8 = scalar_lea.sflag [#allocation4], 1
    %9 = vsyncpa %s8, 0
    %10 = vsyncpa [#allocation7], 0
    %s11 = scalar_lea.sflag [#allocation7], 1
    %12 = vsyncpa %s11, 0
    %13 = vsyncpa [#allocation5], 0
    %s14 = scalar_lea.sflag [#allocation5], 1
    %15 = vsyncpa %s14, 0
    loop: start=0, step=1, limit=18
    $region2: #{tpu_custom_call.1} parent=1 // loop_pre_header
      _
    $region3: #{tpu_custom_call.1} parent=1 // loop_header
      %s17 = sphi 0, %s21
      %p18 = scmp.ge.s32.totalorder %s17, 18
      %s24 = sphi 0, %s43
      %s25 = sphi 0, %s39
      %s26 = sphi 0, %s35
      %s27 = sphi 0, %s24
      %s28 = sphi 0, %s25
      %s29 = sphi 0, %s26
      %s30 = sphi 0, %s27
      %s31 = sphi 0, %s28
      %s32 = sphi 0, %s29
      %s48 = sphi 0, %s50
      %s51 = sphi 0, %s48
      %s52 = sphi 0, %s51
      %s68 = sphi 0, %s52
      %s76 = sphi 0, %s78
      %s79 = sphi 0, %s76
      %s80 = sphi 0, %s79
      %s96 = sphi 0, %s80
      %s104 = sphi 0, %s106
      %s107 = sphi 0, %s104
      %s108 = sphi 0, %s107
      %s124 = sphi 0, %s108
    $region4: #{tpu_custom_call.1} parent=1 // loop_header_branch
      %20 = sbr.rel (%p18) target = $region8
    $region5: #{tpu_custom_call.1} parent=1 // loop_body
      %s22 = ssub.s32 %s17, 1
      %s23 = ssub.s32 %s17, 2
      %s33 = sadd.s32 1, %s26
      %p34 = scmp.ge.s32.totalorder %s33, 2
      %s35 = scalar_select %p34, 0, %s33
      %s36 = sadd.s32 1, %s25
      %s37 = scalar_select %p34, %s36, %s25
      %p38 = scmp.ge.s32.totalorder %s37, 4
      %s39 = scalar_select %p38, 0, %s37
      %s40 = sadd.s32 1, %s24
      %s41 = scalar_select %p38, %s40, %s24
      %p42 = scmp.ge.s32.totalorder %s41, 2
      %s43 = scalar_select %p42, 0, %s41
      %s44 = ssub.s32 %s24, %s43
      %s45 = ssub.s32 %s26, %s35
      %s46 = sor.u32 %s44, %s45
      %p47 = scmp.eq.s32.totalorder %s46, 0
      %s49 = sadd.s32 %s48, 1
      %s50 = scalar_select %p47, %s48, %s49
      %p53 = pneg %p47
      %p54 = scmp.eq.s32.totalorder %s17, 15
      %p55 = por %p53, %p54
      %p56 = scmp.ne.s32.totalorder %s48, %s51
      %p57 = scmp.eq.s32.totalorder %s17, 0
      %p58 = por %p56, %p57
      %p59 = scmp.ne.s32.totalorder %s48, %s51
      %p60 = scmp.eq.s32.totalorder %s22, 15
      %p61 = por %p59, %p60
      %p62 = scmp.ne.s32.totalorder %s51, %s52
      %p63 = scmp.eq.s32.totalorder %s22, 0
      %p64 = por %p62, %p63
      %p65 = scmp.ne.s32.totalorder %s51, %s52
      %p66 = scmp.eq.s32.totalorder %s23, 15
      %p67 = por %p65, %p66
      %p69 = scmp.ne.s32.totalorder %s52, %s68
      %p70 = scmp.eq.s32.totalorder %s23, 0
      %p71 = por %p69, %p70
      %s72 = ssub.s32 %s26, %s35
      %s73 = ssub.s32 %s25, %s39
      %s74 = sor.u32 %s72, %s73
      %p75 = scmp.eq.s32.totalorder %s74, 0
      %s77 = sadd.s32 %s76, 1
      %s78 = scalar_select %p75, %s76, %s77
      %p81 = pneg %p75
      %p82 = scmp.eq.s32.totalorder %s17, 15
      %p83 = por %p81, %p82
      %p84 = scmp.ne.s32.totalorder %s76, %s79
      %p85 = scmp.eq.s32.totalorder %s17, 0
      %p86 = por %p84, %p85
      %p87 = scmp.ne.s32.totalorder %s76, %s79
      %p88 = scmp.eq.s32.totalorder %s22, 15
      %p89 = por %p87, %p88
      %p90 = scmp.ne.s32.totalorder %s79, %s80
      %p91 = scmp.eq.s32.totalorder %s22, 0
      %p92 = por %p90, %p91
      %p93 = scmp.ne.s32.totalorder %s79, %s80
      %p94 = scmp.eq.s32.totalorder %s23, 15
      %p95 = por %p93, %p94
      %p97 = scmp.ne.s32.totalorder %s80, %s96
      %p98 = scmp.eq.s32.totalorder %s23, 0
      %p99 = por %p97, %p98
      %s100 = ssub.s32 %s24, %s43
      %s101 = ssub.s32 %s25, %s39
      %s102 = sor.u32 %s100, %s101
      %p103 = scmp.eq.s32.totalorder %s102, 0
      %s105 = sadd.s32 %s104, 1
      %s106 = scalar_select %p103, %s104, %s105
      %p109 = pneg %p103
      %p110 = scmp.eq.s32.totalorder %s17, 15
      %p111 = por %p109, %p110
      %p112 = scmp.ne.s32.totalorder %s104, %s107
      %p113 = scmp.eq.s32.totalorder %s17, 0
      %p114 = por %p112, %p113
      %p115 = scmp.ne.s32.totalorder %s104, %s107
      %p116 = scmp.eq.s32.totalorder %s22, 15
      %p117 = por %p115, %p116
      %p118 = scmp.ne.s32.totalorder %s107, %s108
      %p119 = scmp.eq.s32.totalorder %s22, 0
      %p120 = por %p118, %p119
      %p121 = scmp.ne.s32.totalorder %s107, %s108
      %p122 = scmp.eq.s32.totalorder %s23, 15
      %p123 = por %p121, %p122
      %p125 = scmp.ne.s32.totalorder %s108, %s124
      %p126 = scmp.eq.s32.totalorder %s23, 0
      %p127 = por %p125, %p126
      %p128 = scmp.le.s32.totalorder 1, %s17
      %p129 = scmp.lt.s32.totalorder %s17, 17
      %p130 = pnand %p128, %p129
      %p131 = pneg %p130
      // Predicated region
      $region9: #{tpu_custom_call.1} parent=5 // pred_check
        _
      $region10: #{tpu_custom_call.1} parent=5 // pred_check_branch
        %133 = sbr.rel (%p130) target = $region12
      $region11: #{tpu_custom_call.1} parent=5 // pred_region
        %s134 = ssub.s32 %s17, 1
      $region12: #{tpu_custom_call.1} parent=5 // pred_fallthru
        _
      %p135 = scmp.lt.s32.totalorder %s17, 16
      // Predicated region
      $region13: #{tpu_custom_call.1} parent=5 // pred_check
        %p136 = pneg %p135
      $region14: #{tpu_custom_call.1} parent=5 // pred_check_branch
        %138 = sbr.rel (%p136) target = $region16
      $region15: #{tpu_custom_call.1} parent=5 // pred_region
        // Predicated region
        $region17: #{tpu_custom_call.1} parent=15 // pred_check
          %p139 = pneg %p58
        $region18: #{tpu_custom_call.1} parent=15 // pred_check_branch
          %141 = sbr.rel (%p139) target = $region20
        $region19: #{tpu_custom_call.1} parent=15 // pred_region
          %s142 = sand.u32 %s48, 1
          %s143 = scalar_lea.sflag [#allocation4], %s142
          %s144 = sand.u32 %s48, 1
          %s145 = smul.addr %s144, 32
          %s146 = scalar_lea.vmem [#allocation3], %s145
          %s147 = smul.u32 4, %s24
          %s149 = ssub.s32 512, 512
          %150 = vsyncadd %s143, %s149
          %s151 = smul.addr %s147, 2
          %s152 = sadd.s32 %s26, %s151
          %s153 = smul.addr %s152, 128
          %s154 = scalar_lea.hbm %s0, %s153
          %s155 = sshll.u32 %s146, 4
          %s156 = int_to_ptr.vmem [resolvable:$true] %s155
          %161 = dma.hbm_to_vmem [thread:$0]  %s154, 512, %s156, %s143, 256, 128, 8
        $region20: #{tpu_custom_call.1} parent=15 // pred_fallthru
          _
        // Predicated region
        $region21: #{tpu_custom_call.1} parent=15 // pred_check
          %p162 = pneg %p86
        $region22: #{tpu_custom_call.1} parent=15 // pred_check_branch
          %164 = sbr.rel (%p162) target = $region24
        $region23: #{tpu_custom_call.1} parent=15 // pred_region
          %s165 = sand.u32 %s76, 1
          %s166 = scalar_lea.sflag [#allocation7], %s165
          %s167 = sand.u32 %s76, 1
          %s168 = smul.addr %s167, 128
          %s169 = scalar_lea.vmem [#allocation6], %s168
          %s170 = smul.u32 16, %s26
          %s172 = ssub.s32 2048, 2048
          %173 = vsyncadd %s166, %s172
          %s174 = smul.addr %s170, 4
          %s175 = sadd.s32 %s25, %s174
          %s176 = smul.addr %s175, 128
          %s177 = scalar_lea.hbm %s1, %s176
          %s178 = sshll.u32 %s169, 4
          %s179 = int_to_ptr.vmem [resolvable:$true] %s178
          %184 = dma.hbm_to_vmem [thread:$0]  %s177, 2048, %s179, %s166, 512, 128, 8
        $region24: #{tpu_custom_call.1} parent=15 // pred_fallthru
          _
      $region16: #{tpu_custom_call.1} parent=5 // pred_fallthru
        _
      %p185 = scmp.le.s32.totalorder 1, %s17
      %p186 = scmp.lt.s32.totalorder %s17, 17
      %p187 = pnand %p185, %p186
      %p188 = pneg %p187
      // Predicated region
      $region25: #{tpu_custom_call.1} parent=5 // pred_check
        _
      $region26: #{tpu_custom_call.1} parent=5 // pred_check_branch
        %190 = sbr.rel (%p187) target = $region28
      $region27: #{tpu_custom_call.1} parent=5 // pred_region
        %s191 = ssub.s32 %s17, 1
        %s192 = sand.u32 %s51, 1
        %s193 = scalar_lea.sflag [#allocation4], %s192
        %s194 = sand.u32 %s51, 1
        %s195 = smul.addr %s194, 32
        %s196 = scalar_lea.vmem [#allocation3], %s195
        // Predicated region
        $region29: #{tpu_custom_call.1} parent=27 // pred_check
          %p197 = pneg %p64
        $region30: #{tpu_custom_call.1} parent=27 // pred_check_branch
          %199 = sbr.rel (%p197) target = $region32
        $region31: #{tpu_custom_call.1} parent=27 // pred_region
          %200 = dma.done %s193, 512
        $region32: #{tpu_custom_call.1} parent=27 // pred_fallthru
          _
        %s201 = sand.u32 %s79, 1
        %s202 = scalar_lea.sflag [#allocation7], %s201
        %s203 = sand.u32 %s79, 1
        %s204 = smul.addr %s203, 128
        %s205 = scalar_lea.vmem [#allocation6], %s204
        // Predicated region
        $region33: #{tpu_custom_call.1} parent=27 // pred_check
          %p206 = pneg %p92
        $region34: #{tpu_custom_call.1} parent=27 // pred_check_branch
          %208 = sbr.rel (%p206) target = $region36
        $region35: #{tpu_custom_call.1} parent=27 // pred_region
          %209 = dma.done %s202, 2048
        $region36: #{tpu_custom_call.1} parent=27 // pred_fallthru
          _
        %s210 = sand.u32 %s51, 1
        %s211 = scalar_lea.sflag [#allocation4], %s210
        %s212 = sand.u32 %s51, 1
        %s213 = smul.addr %s212, 32
        %s214 = scalar_lea.vmem [#allocation3], %s213
        %p215 = pneg %p64
        %p216 = pneg %p61
        %s217 = sand.u32 %s79, 1
        %s218 = scalar_lea.sflag [#allocation7], %s217
        %s219 = sand.u32 %s79, 1
        %s220 = smul.addr %s219, 128
        %s221 = scalar_lea.vmem [#allocation6], %s220
        %p222 = pneg %p92
        %p223 = pneg %p89
        %p224 = pneg %p120
        %p225 = pneg %p117
        %s226 = sand.u32 %s107, 1
        %s227 = scalar_lea.sflag [#allocation5], %s226
        %s228 = sand.u32 %s107, 1
        %s229 = smul.addr %s228, 32
        %s230 = scalar_lea.vmem [#allocation8], %s229
        %s231 = smul.u32 4, %s27
        %s232 = smul.u32 16, %s29
        %s233 = smul.u32 4, %s27
        %p234 = scmp.eq.s32.totalorder %s29, 0
        // Predicated region
        $region37: #{tpu_custom_call.1} parent=27 // pred_check
          %p235 = pneg %p234
        $region38: #{tpu_custom_call.1} parent=27 // pred_check_branch
          %237 = sbr.rel (%p235) target = $region40
        $region39: #{tpu_custom_call.1} parent=27 // pred_region
          %238 = vst [vmem:[#allocation2] sm:$0xff] 0.0
          %239 = vst [vmem:[#allocation2 + $0x8] sm:$0xff] 0.0
          %240 = vst [vmem:[#allocation2 + $0x10] sm:$0xff] 0.0
          %241 = vst [vmem:[#allocation2 + $0x18] sm:$0xff] 0.0
        $region40: #{tpu_custom_call.1} parent=27 // pred_fallthru
          _
        %v242 = vld [vmem:[#allocation2] sm:$0xff]
        %v243 = vld [vmem:[#allocation2 + $0x8] sm:$0xff]
        %v244 = vld [vmem:[#allocation2 + $0x10] sm:$0xff]
        %v245 = vld [vmem:[#allocation2 + $0x18] sm:$0xff]
        %v246 = vld [vmem:[%s196] sm:$0xff]
        %v247 = vld [vmem:[%s196 + $0x8] sm:$0xff]
        %v248 = vld [vmem:[%s196 + $0x10] sm:$0xff]
        %v249 = vld [vmem:[%s196 + $0x18] sm:$0xff]
        %v250 = vld [vmem:[%s205] sm:$0xff]
        %v251 = vld [vmem:[%s205 + $0x8] sm:$0xff]
        %v252 = vld [vmem:[%s205 + $0x10] sm:$0xff]
        %v253 = vld [vmem:[%s205 + $0x18] sm:$0xff]
        %v254 = vld [vmem:[%s205 + $0x20] sm:$0xff]
        %v255 = vld [vmem:[%s205 + $0x28] sm:$0xff]
        %v256 = vld [vmem:[%s205 + $0x30] sm:$0xff]
        %v257 = vld [vmem:[%s205 + $0x38] sm:$0xff]
        %v258 = vld [vmem:[%s205 + $0x40] sm:$0xff]
        %v259 = vld [vmem:[%s205 + $0x48] sm:$0xff]
        %v260 = vld [vmem:[%s205 + $0x50] sm:$0xff]
        %v261 = vld [vmem:[%s205 + $0x58] sm:$0xff]
        %v262 = vld [vmem:[%s205 + $0x60] sm:$0xff]
        %v263 = vld [vmem:[%s205 + $0x68] sm:$0xff]
        %v264 = vld [vmem:[%s205 + $0x70] sm:$0xff]
        %v265 = vld [vmem:[%s205 + $0x78] sm:$0xff]
        %266 = vmatprep.subr.mxu0 0.0
        %267 = vmatpush1.msra.mxu0 %v265
        %268 = vmatprep.subr.mxu0 0.0
        %269 = vmatpush1.msra.mxu0 %v264
        %270 = vmatprep.subr.mxu0 0.0
        %271 = vmatpush1.msra.mxu0 %v263
        %272 = vmatprep.subr.mxu0 0.0
        %273 = vmatpush1.msra.mxu0 %v262
        %274 = vmatprep.subr.mxu0 0.0
        %275 = vmatpush1.msra.mxu0 %v261
        %276 = vmatprep.subr.mxu0 0.0
        %277 = vmatpush1.msra.mxu0 %v260
        %278 = vmatprep.subr.mxu0 0.0
        %279 = vmatpush1.msra.mxu0 %v259
        %280 = vmatprep.subr.mxu0 0.0
        %281 = vmatpush1.msra.mxu0 %v258
        %282 = vmatprep.subr.mxu0 0.0
        %283 = vmatpush1.msra.mxu0 %v257
        %284 = vmatprep.subr.mxu0 0.0
        %285 = vmatpush1.msra.mxu0 %v256
        %286 = vmatprep.subr.mxu0 0.0
        %287 = vmatpush1.msra.mxu0 %v255
        %288 = vmatprep.subr.mxu0 0.0
        %289 = vmatpush1.msra.mxu0 %v254
        %290 = vmatprep.subr.mxu0 0.0
        %291 = vmatpush1.msra.mxu0 %v253
        %292 = vmatprep.subr.mxu0 0.0
        %293 = vmatpush1.msra.mxu0 %v252
        %294 = vmatprep.subr.mxu0 0.0
        %295 = vmatpush1.msra.mxu0 %v251
        %296 = vmatprep.subr.mxu0 0.0
        %297 = vmatpush1.msra.mxu0 %v250
        %298 = vmatprep.subr.mxu0 0.0
        %299 = vmatpush2.msra.mxu0 0.0
        %300 = vmatprep.subr.mxu0 0.0
        %301 = vmatpush2.msra.mxu0 0.0
        %302 = vmatprep.subr.mxu0 0.0
        %303 = vmatpush2.msra.mxu0 0.0
        %304 = vmatprep.subr.mxu0 0.0
        %305 = vmatpush2.msra.mxu0 0.0
        %306 = vmatprep.subr.mxu0 0.0
        %307 = vmatpush2.msra.mxu0 0.0
        %308 = vmatprep.subr.mxu0 0.0
        %309 = vmatpush2.msra.mxu0 0.0
        %310 = vmatprep.subr.mxu0 0.0
        %311 = vmatpush2.msra.mxu0 0.0
        %312 = vmatprep.subr.mxu0 0.0
        %313 = vmatpush2.msra.mxu0 0.0
        %314 = vmatprep.subr.mxu0 0.0
        %315 = vmatpush2.msra.mxu0 0.0
        %316 = vmatprep.subr.mxu0 0.0
        %317 = vmatpush2.msra.mxu0 0.0
        %318 = vmatprep.subr.mxu0 0.0
        %319 = vmatpush2.msra.mxu0 0.0
        %320 = vmatprep.subr.mxu0 0.0
        %321 = vmatpush2.msra.mxu0 0.0
        %322 = vmatprep.subr.mxu0 0.0
        %323 = vmatpush2.msra.mxu0 0.0
        %324 = vmatprep.subr.mxu0 0.0
        %325 = vmatpush2.msra.mxu0 0.0
        %326 = vmatprep.subr.mxu0 0.0
        %327 = vmatpush2.msra.mxu0 0.0
        %328 = vmatprep.subr.mxu0 0.0
        %329 = vmatpush2.msra.mxu0 0.0
        %330 = vmatprep.mubr.f32.mxu0 0.0
        %331 = vmatmul.mubr.f32.gmra.mxu0 %v246
        %v332 = vpop.f32.mrf.mxu0
        %v333 = vadd.f32 0.0, %v332
        %v334 = vpop.f32.mrf.mxu0
        %335 = vmatprep.mubr.f32.mxu0 0.0
        %336 = vmatmul.mubr.f32.gmra.mxu0 %v247
        %v337 = vpop.f32.mrf.mxu0
        %v338 = vadd.f32 0.0, %v337
        %v339 = vpop.f32.mrf.mxu0
        %340 = vmatprep.mubr.f32.mxu0 0.0
        %341 = vmatmul.mubr.f32.gmra.mxu0 %v248
        %v342 = vpop.f32.mrf.mxu0
        %v343 = vadd.f32 0.0, %v342
        %v344 = vpop.f32.mrf.mxu0
        %345 = vmatprep.mubr.f32.mxu0 0.0
        %346 = vmatmul.mubr.f32.gmra.mxu0 %v249
        %v347 = vpop.f32.mrf.mxu0
        %v348 = vadd.f32 0.0, %v347
        %v349 = vpop.f32.mrf.mxu0
        %350 = vdwg.mxu0
        %v351 = vadd.f32 %v242, %v333
        %v352 = vadd.f32 %v243, %v338
        %v353 = vadd.f32 %v244, %v343
        %v354 = vadd.f32 %v245, %v348
        %355 = vst [vmem:[#allocation2] sm:$0xff] %v351
        %356 = vst [vmem:[#allocation2 + $0x8] sm:$0xff] %v352
        %357 = vst [vmem:[#allocation2 + $0x10] sm:$0xff] %v353
        %358 = vst [vmem:[#allocation2 + $0x18] sm:$0xff] %v354
        %p359 = scmp.eq.s32.totalorder %s29, 1
        // Predicated region
        $region41: #{tpu_custom_call.1} parent=27 // pred_check
          %p360 = pneg %p359
        $region42: #{tpu_custom_call.1} parent=27 // pred_check_branch
          %362 = sbr.rel (%p360) target = $region44
        $region43: #{tpu_custom_call.1} parent=27 // pred_region
          %v363 = vld [vmem:[#allocation2] sm:$0xff]
          %v364 = vld [vmem:[#allocation2 + $0x8] sm:$0xff]
          %v365 = vld [vmem:[#allocation2 + $0x10] sm:$0xff]
          %v366 = vld [vmem:[#allocation2 + $0x18] sm:$0xff]
          %367 = vst [vmem:[%s230] sm:$0xff] %v363
          %368 = vst [vmem:[%s230 + $0x8] sm:$0xff] %v364
          %369 = vst [vmem:[%s230 + $0x10] sm:$0xff] %v365
          %370 = vst [vmem:[%s230 + $0x18] sm:$0xff] %v366
        $region44: #{tpu_custom_call.1} parent=27 // pred_fallthru
          _
        %s371 = sand.u32 %s107, 1
        %s372 = scalar_lea.sflag [#allocation5], %s371
        %s373 = sand.u32 %s107, 1
        %s374 = smul.addr %s373, 32
        %s375 = scalar_lea.vmem [#allocation8], %s374
        // Predicated region
        $region45: #{tpu_custom_call.1} parent=27 // pred_check
          %p376 = pneg %p117
        $region46: #{tpu_custom_call.1} parent=27 // pred_check_branch
          %378 = sbr.rel (%p376) target = $region48
        $region47: #{tpu_custom_call.1} parent=27 // pred_region
          %s379 = smul.u32 4, %s27
          %s381 = ssub.s32 512, 512
          %382 = vsyncadd %s372, %s381
          %s383 = smul.addr %s379, 4
          %s384 = sadd.s32 %s28, %s383
          %s385 = smul.addr %s384, 128
          %s386 = scalar_lea.hbm %s2, %s385
          %s387 = sshll.u32 %s375, 4
          %s388 = int_to_ptr.vmem [resolvable:$true] %s387
          %393 = dma.vmem_to_hbm [thread:$0]  %s388, 512, %s386, %s372, 128, 512, 8
        $region48: #{tpu_custom_call.1} parent=27 // pred_fallthru
          _
      $region28: #{tpu_custom_call.1} parent=5 // pred_fallthru
        _
      %p394 = scmp.le.s32.totalorder 2, %s17
      // Predicated region
      $region49: #{tpu_custom_call.1} parent=5 // pred_check
        %p395 = pneg %p394
      $region50: #{tpu_custom_call.1} parent=5 // pred_check_branch
        %397 = sbr.rel (%p395) target = $region52
      $region51: #{tpu_custom_call.1} parent=5 // pred_region
        %s398 = ssub.s32 %s17, 2
        // Predicated region
        $region53: #{tpu_custom_call.1} parent=51 // pred_check
          %p399 = pneg %p123
        $region54: #{tpu_custom_call.1} parent=51 // pred_check_branch
          %401 = sbr.rel (%p399) target = $region56
        $region55: #{tpu_custom_call.1} parent=51 // pred_region
          %s402 = sand.u32 %s108, 1
          %s403 = scalar_lea.sflag [#allocation5], %s402
          %s404 = sand.u32 %s108, 1
          %s405 = smul.addr %s404, 32
          %s406 = scalar_lea.vmem [#allocation8], %s405
          %407 = dma.done %s403, 512
        $region56: #{tpu_custom_call.1} parent=51 // pred_fallthru
          _
      $region52: #{tpu_custom_call.1} parent=5 // pred_fallthru
        _
    $region6: #{tpu_custom_call.1} parent=1 // loop_footer
      %s21 = sadd.s32 1, %s17
    $region7: #{tpu_custom_call.1} parent=1 // loop_footer_branch
      %16 = sbr.rel target = $region3
    $region8: #{tpu_custom_call.1} parent=1 // loop_exit
      _
    %408 = vsyncpa [#allocation4], 1
    %s409 = scalar_lea.sflag [#allocation4], 1
    %410 = vsyncpa %s409, 1
    %411 = vsyncpa [#allocation7], 1
    %s412 = scalar_lea.sflag [#allocation7], 1
    %413 = vsyncpa %s412, 1
    %414 = vsyncpa [#allocation5], 1
    %s415 = scalar_lea.sflag [#allocation5], 1
    %416 = vsyncpa %s415, 1

</llo_original>
